<compile_context>
chip_gen: v7x
topology: tpu7x:2x2x1
jax: 0.10.0
libtpu: 0.0.40
codegen_flags: <defaults>
</compile_context>

<pallas_src>
import functools

import jax
import jax.numpy as jnp
from jax.experimental import pallas as pl
from jax.experimental.pallas import tpu as pltpu


def _cdiv(a, b):
    return -(-a // b)


def _round_up(a, b):
    return _cdiv(a, b) * b


def _kd_kernel(x_ref, t_ref, o_ref, *scratch, c_t, hw, tile_cols, square,
               single_step, first_masked, num_j):
    """Per-(batch-block, column-split) partial sums of (x[:, :c_t] - t)**2.

    x_ref : (n_blk, c_blk, tile_cols) VMEM, c_blk >= c_t
    t_ref : (n_blk, c_t,   tile_cols) VMEM
    o_ref : (1, 1) f32 SMEM partial sum
    scratch: () in single-step mode, else one (n_blk, c_t, tile_cols) f32
             VMEM accumulator (VPU-only steady-state inner loop).
    """
    x = x_ref[...]
    if x.shape[1] != c_t:                 # channel narrow on the VMEM block
        x = x[:, :c_t, :]
    x = x.astype(jnp.float32)
    t = t_ref[...].astype(jnp.float32)

    d = x - t
    contrib = d * d if square else d

    if single_step:
        # Whole spatial extent in one tile: no scratch RMW, direct reduce.
        o_ref[0, 0] = jnp.sum(contrib)
        return

    acc_ref = scratch[0]
    j = pl.program_id(2)
    tile_idx = pl.program_id(1) * num_j + j

    @pl.when(j == 0)
    def _init():
        acc_ref[...] = jnp.zeros_like(acc_ref)

    if first_masked is None:
        acc_ref[...] += contrib
    else:
        # Only the tail / fully-out-of-range tiles pay the iota+compare+select.
        @pl.when(tile_idx < first_masked)
        def _plain():
            acc_ref[...] += contrib

        @pl.when(tile_idx >= first_masked)
        def _masked():
            col = (tile_idx * tile_cols
                   + jax.lax.broadcasted_iota(jnp.int32, contrib.shape, 2))
            acc_ref[...] += jnp.where(col < hw, contrib, jnp.float32(0.0))

    @pl.when(j == num_j - 1)
    def _flush():
        o_ref[0, 0] = jnp.sum(acc_ref[...])


def _vmem_budget():
    """(vmem_limit_bytes, modeled-tile budget) derived from the device."""
    try:
        cap = int(getattr(pltpu.get_tpu_info(), "vmem_capacity_bytes",
                          64 * 1024 * 1024))
    except Exception:
        cap = 64 * 1024 * 1024                         # conservative fallback
    vmem_limit = min((cap * 3) // 4, 100 * 1024 * 1024)  # v5e/v6e~96M, v7x~48M
    tile_budget = (vmem_limit * 5) // 8                  # pipeline headroom
    return vmem_limit, tile_budget


def cosine_kd_loss(inputs, targets, reduction="mean", norm="L2",
                   _tile_budget_bytes=None):
    """Pallas equivalent of CosineKnowledgeDistillationLoss.forward."""
    n, c_t, h, w = targets.shape
    c_in = inputs.shape[1]
    assert inputs.shape[0] == n and inputs.shape[2:] == targets.shape[2:]
    assert c_in >= c_t
    hw = h * w
    square = norm.upper() == "L2"

    # Copy-free contiguous reshapes; the channel narrow happens via BlockSpec.
    x3 = inputs.reshape(n, c_in, hw)
    t3 = targets.reshape(n, c_t, hw)

    x_bytes = jnp.dtype(inputs.dtype).itemsize
    t_bytes = jnp.dtype(targets.dtype).itemsize
    sub_x = max(8, 32 // x_bytes)     # sublane multiple: f32 8, bf16 16, i8 32
    sub_t = max(8, 32 // t_bytes)

    # Input-channel block: round C_t up to the sublane multiple instead of
    # reading all of C_in (DMA waste capped at sub_x - 1 rows).
    # TODO(synk): for c_t < 8 with c_in == c_t, a copy-free (n, c_t*hw/128, 128)
    # reshape would restore full sublane utilization; skipped (kernel is
    # HBM-bound, this only affects the on-chip side).
    c_blk = min(c_in, _round_up(c_t, sub_x))

    vmem_limit, budget = _vmem_budget()
    if _tile_budget_bytes is not None:    # test hook: force the tiled path
        budget = int(_tile_budget_bytes)

    # VMEM-resident rows pad to the sublane multiple; model that.
    stream_per_col = (_round_up(c_blk, sub_x) * x_bytes
                      + _round_up(c_t, sub_t) * t_bytes)       # per batch item
    per_col_item = 2 * stream_per_col + 4 * _round_up(c_t, 8)  # 2 bufs + acc
    hw_pad = _round_up(hw, 128)

    # Batch blocking for small feature maps: pack several batch items per grid
    # step so each step streams >= ~2 MiB (amortizes per-step overhead).
    target_step = 2 * 1024 * 1024
    item_stream = stream_per_col * hw
    n_blk = 1
    if n > 1 and item_stream < target_step:
        want = _cdiv(target_step, max(item_stream, 1))
        divs = [d for d in range(1, n + 1) if n % d == 0]
        n_blk = next((d for d in divs if d >= want), n)
        while n_blk > 1 and n_blk * 2 * stream_per_col * hw_pad > budget:
            n_blk = max(d for d in divs if d < n_blk)
    n_outer = n // n_blk

    # Column tiling: biggest 128-multiple tile that fits the budget.
    if n_blk > 1:
        tile_cols = hw                    # whole spatial extent per step
    else:
        cap = max(128, ((budget // per_col_item) // 128) * 128)
        tile_cols = hw if hw <= cap else cap
    num_tiles = _cdiv(hw, tile_cols)
    single_step = num_tiles == 1

    # Feed v7x's second TensorCore when the batch axis alone is odd / 1:
    # split column tiles across an extra parallel grid axis.
    col_par = 2 if (num_tiles >= 2 and n_outer % 2 == 1) else 1
    num_j = _cdiv(num_tiles, col_par)
    ragged_split = (num_tiles % col_par) != 0
    mask_tail = (hw % tile_cols) != 0
    if mask_tail:
        first_masked = num_tiles - 1
    elif ragged_split:
        first_masked = num_tiles
    else:
        first_masked = None

    if ragged_split:
        def col_idx(p, j):                # clamp: never DMA a fully-OOB block
            return jnp.minimum(p * num_j + j, num_tiles - 1)
    else:
        def col_idx(p, j):
            return p * num_j + j

    kernel = functools.partial(
        _kd_kernel, c_t=c_t, hw=hw, tile_cols=tile_cols, square=square,
        single_step=single_step, first_masked=first_masked, num_j=num_j)

    scratch_shapes = [] if single_step else [
        pltpu.VMEM((n_blk, c_t, tile_cols), jnp.float32)]

    total_elems = n * c_t * hw
    cost = pl.CostEstimate(
        flops=(3 if square else 2) * total_elems,
        transcendentals=0,
        bytes_accessed=n * hw * (c_blk * x_bytes + c_t * t_bytes)
        + 4 * n_outer * col_par)

    partials = pl.pallas_call(
        kernel,
        out_shape=jax.ShapeDtypeStruct((n_outer, col_par), jnp.float32),
        grid=(n_outer, col_par, num_j),
        in_specs=[
            pl.BlockSpec((n_blk, c_blk, tile_cols),
                         lambda i, p, j: (i, 0, col_idx(p, j))),
            pl.BlockSpec((n_blk, c_t, tile_cols),
                         lambda i, p, j: (i, 0, col_idx(p, j))),
        ],
        out_specs=pl.BlockSpec((1, 1), lambda i, p, j: (i, p),
                               memory_space=pltpu.SMEM),
        scratch_shapes=scratch_shapes,
        compiler_params=pltpu.CompilerParams(
            dimension_semantics=("parallel", "parallel", "arbitrary"),
            vmem_limit_bytes=int(vmem_limit)),
        cost_estimate=cost,
    )(x3, t3)

    total = jnp.sum(partials)

    if reduction == "mean":
        # mean over dim=1 then mean over (N,H,W) == global_sum / (N*C*H*W)
        return total / jnp.float32(n * c_t * hw)
    elif reduction == "sum":
        # mean over dim=1 then sum over (N,H,W)  == global_sum / C
        return total / jnp.float32(c_t)
    else:
        # TODO(synk): reduction='none' (per-position (N,H,W) loss map) is not
        # lowered to a kernel; only 'mean' / 'sum' are supported.
        raise NotImplementedError("reduction must be 'mean' or 'sum'")


if __name__ == "__main__":
    key = jax.random.PRNGKey(0)
    k1, k2, k3, k4, k5, k6 = jax.random.split(key, 6)

    # --- A: small feature map; exercises channel narrow (6 -> 4), batch
    #        blocking and the single-step (scratch-free) path. --------------
    inputs = jax.random.normal(k1, (2, 6, 16, 16), dtype=jnp.float32)
    targets = jax.random.normal(k2, (2, 4, 16, 16), dtype=jnp.float32)

    out = jax.block_until_ready(
        cosine_kd_loss(inputs, targets, reduction="mean", norm="L2"))
    ref = jnp.mean(jnp.mean((inputs[:, :4] - targets) ** 2, axis=1))
    assert jnp.allclose(out, ref, rtol=1e-5, atol=1e-5), (out, ref)

    out_sum = jax.block_until_ready(
        cosine_kd_loss(inputs, targets, reduction="sum", norm="L2"))
    ref_sum = jnp.sum(jnp.mean((inputs[:, :4] - targets) ** 2, axis=1))
    assert jnp.allclose(out_sum, ref_sum, rtol=1e-5, atol=1e-5), (out_sum, ref_sum)

    # non-L2 (plain signed diff, matching the PyTorch `else` branch) / mean
    out_l1 = jax.block_until_ready(
        cosine_kd_loss(inputs, targets, reduction="mean", norm="none"))
    ref_l1 = jnp.mean(jnp.mean(inputs[:, :4] - targets, axis=1))
    assert jnp.allclose(out_l1, ref_l1, rtol=1e-5, atol=1e-5), (out_l1, ref_l1)

    # --- B: forced-small tile budget; exercises the multi-column-step path
    #        (accumulator scratch), the rounded-up channel block (8 of 11
    #        channels, non-dividing) and the gated tail mask + column split.
    inputs_b = jax.random.normal(k3, (1, 11, 48, 41), dtype=jnp.float32)
    targets_b = jax.random.normal(k4, (1, 8, 48, 41), dtype=jnp.float32)
    out_b = jax.block_until_ready(
        cosine_kd_loss(inputs_b, targets_b, reduction="mean", norm="L2",
                       _tile_budget_bytes=20_000))
    ref_b = jnp.mean(jnp.mean((inputs_b[:, :8] - targets_b) ** 2, axis=1))
    assert jnp.allclose(out_b, ref_b, rtol=1e-4, atol=1e-5), (out_b, ref_b)

    # --- C: odd number of column tiles; exercises the clamped index map,
    #        fully-masked out-of-range tiles and the in-kernel channel slice.
    inputs_c = jax.random.normal(k5, (1, 5, 48, 40), dtype=jnp.float32)
    targets_c = jax.random.normal(k6, (1, 3, 48, 40), dtype=jnp.float32)
    out_c = jax.block_until_ready(
        cosine_kd_loss(inputs_c, targets_c, reduction="sum", norm="L2",
                       _tile_budget_bytes=20_000))
    ref_c = jnp.sum(jnp.mean((inputs_c[:, :3] - targets_c) ** 2, axis=1))
    assert jnp.allclose(out_c, ref_c, rtol=1e-4, atol=1e-5), (out_c, ref_c)

    print("KERNEL_OK")
</pallas_src>

<mosaic_0001>
module attributes {stable_mosaic.version = 11 : i64} {
  func.func @_kd_kernel(%arg0: i32, %arg1: i32, %arg2: i32, %arg3: memref<2x6x256xf32, #tpu.memory_space<vmem>>, %arg4: memref<2x4x256xf32, #tpu.memory_space<vmem>>, %arg5: memref<1x1xf32, #tpu.memory_space<smem>>) attributes {dimension_semantics = [#tpu.dimension_semantics<parallel>, #tpu.dimension_semantics<parallel>, #tpu.dimension_semantics<arbitrary>], iteration_bounds = array<i64: 1, 1, 1>, scalar_prefetch = 0 : i64, scratch_operands = 0 : i64, tpu.core_type = #tpu.core_type<tc>, window_params = [{transform_indices = @transform_0, window_bounds = array<i64: 2, 6, 256>}, {transform_indices = @transform_1, window_bounds = array<i64: 2, 4, 256>}, {transform_indices = @transform_2, window_bounds = array<i64: 1, 1>}]} {
    %c0 = arith.constant 0 : index
    %c0_0 = arith.constant 0 : index
    %c0_1 = arith.constant 0 : index
    %0 = vector.load %arg3[%c0, %c0_0, %c0_1] : memref<2x6x256xf32, #tpu.memory_space<vmem>>, vector<2x6x256xf32>
    %1 = vector.extract_strided_slice %0 {offsets = [0, 0, 0], sizes = [2, 4, 256], strides = [1, 1, 1]} : vector<2x6x256xf32> to vector<2x4x256xf32>
    %c0_2 = arith.constant 0 : index
    %c0_3 = arith.constant 0 : index
    %c0_4 = arith.constant 0 : index
    %2 = vector.load %arg4[%c0_2, %c0_3, %c0_4] : memref<2x4x256xf32, #tpu.memory_space<vmem>>, vector<2x4x256xf32>
    %3 = arith.subf %1, %2 : vector<2x4x256xf32>
    %4 = arith.mulf %3, %3 : vector<2x4x256xf32>
    %5 = vector.shape_cast %4 : vector<2x4x256xf32> to vector<1x2x4x256xf32>
    %cst = arith.constant dense<0.000000e+00> : vector<1xf32>
    %6 = vector.multi_reduction <add>, %5, %cst [1, 2, 3] : vector<1x2x4x256xf32> to vector<1xf32>
    %7 = vector.shape_cast %6 : vector<1xf32> to vector<1x1x1x1xf32>
    %8 = vector.extract %7[0, 0, 0, 0] : f32 from vector<1x1x1x1xf32>
    %c0_5 = arith.constant 0 : index
    %c0_6 = arith.constant 0 : index
    %9 = memref.load %arg5[%c0_5, %c0_6] : memref<1x1xf32, #tpu.memory_space<smem>>
    memref.store %8, %arg5[%c0_5, %c0_6] : memref<1x1xf32, #tpu.memory_space<smem>>
    return
  }
  func.func @transform_0(%arg0: i32, %arg1: i32, %arg2: i32) -> (i32, i32, i32) {
    %c1_i32 = arith.constant 1 : i32
    %0 = arith.muli %arg1, %c1_i32 : i32
    %1 = arith.addi %0, %arg2 : i32
    %c0_i32 = arith.constant 0 : i32
    %c0_i32_0 = arith.constant 0 : i32
    return %arg0, %c0_i32, %1 : i32, i32, i32
  }
  func.func @transform_1(%arg0: i32, %arg1: i32, %arg2: i32) -> (i32, i32, i32) {
    %c1_i32 = arith.constant 1 : i32
    %0 = arith.muli %arg1, %c1_i32 : i32
    %1 = arith.addi %0, %arg2 : i32
    %c0_i32 = arith.constant 0 : i32
    %c0_i32_0 = arith.constant 0 : i32
    return %arg0, %c0_i32, %1 : i32, i32, i32
  }
  func.func @transform_2(%arg0: i32, %arg1: i32, %arg2: i32) -> (i32, i32) {
    %c0_i32 = arith.constant 0 : i32
    return %arg0, %arg1 : i32, i32
  }
}

</mosaic_0001>

<llo_original>
// kernel: tpu_custom_call.1
$region0: #{tpu_custom_call.1}
  #allocation0 [shape = 'u32[]', space=smem, size = 0x4, offset = 0x4, fixed_abs, tag = 'smem constant byte address 0x4 - core index']
  #allocation1 [shape = 'u32[144,128]{1,0:T(1,128)}', space=vmem, size = 0x12000, scoped, tag = 'internal scratch']
  %s0 = inlined_call_operand.vmem [shape: f32[2,6,256], index: 0, kind: input, shape index: {}]
  %s1 = inlined_call_operand.vmem [shape: f32[2,4,256], index: 1, kind: input, shape index: {}]
  %s2 = inlined_call_operand.hbm [shape: f32[1,1], index: 2, kind: output, shape index: {}]
  %s3 = sld [smem:[#allocation0]]
  $region18: #{tpu_custom_call.1} parent=0
    _
  %s5 = ssub.s32 1, %s3
  %s6 = scalar_select 0, %s5, %s3
  $region1: #{tpu_custom_call.1} parent=0
    #allocation2 [shape = 'u8[512]{0}', space=smem, size = 0x200, scoped, tag = 'output window, operand 0, single buffered']
    #allocation3 [shape = 's32[1]{0}', space=sflag, size = 0x4, scoped, tag = 'scoped memory for tpu_custom_call.1']
    %7 = vsyncpa [#allocation3], 0
    // Predicated region
    $region2: #{tpu_custom_call.1} parent=1 // pred_check
      _
    $region3: #{tpu_custom_call.1} parent=1 // pred_check_branch
      %9 = sbr.rel (0) target = $region5
    $region4: #{tpu_custom_call.1} parent=1 // pred_region
      %s10 = sadd.s32 0, 0
      %s11 = smul.u32 2, %s10
      %p12 = scmp.lt.s32.totalorder %s11, 1
      %s13 = scalar_select %p12, %s11, 1
      %s14 = smul.addr %s13, 8
      %s15 = scalar_lea.vmem %s0, %s14
      %s16 = sadd.s32 0, 0
      %s17 = smul.u32 2, %s16
    $region5: #{tpu_custom_call.1} parent=1 // pred_fallthru
      _
    // Predicated region
    $region6: #{tpu_custom_call.1} parent=1 // pred_check
      _
    $region7: #{tpu_custom_call.1} parent=1 // pred_check_branch
      %19 = sbr.rel (0) target = $region9
    $region8: #{tpu_custom_call.1} parent=1 // pred_region
      %s20 = sadd.s32 0, 0
      %s21 = smul.u32 2, %s20
      %p22 = scmp.lt.s32.totalorder %s21, 1
      %s23 = scalar_select %p22, %s21, 1
      %s24 = smul.addr %s23, 4
      %s25 = scalar_lea.vmem %s1, %s24
      %s26 = sadd.s32 0, 0
      %s27 = smul.u32 2, %s26
    $region9: #{tpu_custom_call.1} parent=1 // pred_fallthru
      _
    %s28 = sadd.s32 0, 0
    %s29 = smul.u32 2, %s28
    %p30 = scmp.lt.s32.totalorder %s29, 1
    %s31 = scalar_select %p30, %s29, 1
    %s32 = smul.addr %s31, 8
    %s33 = scalar_lea.vmem %s0, %s32
    %s34 = sadd.s32 0, 0
    %s35 = smul.u32 2, %s34
    %p36 = scmp.lt.s32.totalorder %s35, 1
    %s37 = scalar_select %p36, %s35, 1
    %s38 = smul.addr %s37, 4
    %s39 = scalar_lea.vmem %s1, %s38
    %s40 = sadd.s32 0, 0
    %s41 = smul.u32 2, %s40
    %p42 = scmp.lt.s32.totalorder %s41, 1
    %s43 = scalar_select %p42, %s41, 1
    %s44 = smul.addr %s43, 8
    %s45 = scalar_lea.vmem %s0, %s44
    %s46 = sadd.s32 0, 0
    %s47 = smul.u32 2, %s46
    %s48 = sadd.s32 0, 0
    %s49 = smul.u32 2, %s48
    %p50 = scmp.lt.s32.totalorder %s49, 1
    %s51 = scalar_select %p50, %s49, 1
    %s52 = smul.addr %s51, 4
    %s53 = scalar_lea.vmem %s1, %s52
    %s54 = sadd.s32 0, 0
    %s55 = smul.u32 2, %s54
    %v56 = vld [vmem:[%s45] sm:$0x3f]
    %v57 = vld [vmem:[%s45 + $0x8] sm:$0x3f]
    %v58 = vld [vmem:[%s45 + $0x10] sm:$0x3f]
    %v59 = vld [vmem:[%s45 + $0x18] sm:$0x3f]
    %v60 = vld [vmem:[%s53] sm:$0xff]
    %v61 = vld [vmem:[%s53 + $0x8] sm:$0xff]
    %v64 = vcombine.high %v60, %v60
    %v65 = vcombine.high %v61, %v61
    %v68 = vsub.f32 %v56, %v60
    %v69 = vsub.f32 %v57, %v64
    %v70 = vsub.f32 %v58, %v61
    %v71 = vsub.f32 %v59, %v65
    %v72 = vmul.f32 %v68, %v68
    %v73 = vmul.f32 %v69, %v69
    %v74 = vmul.f32 %v70, %v70
    %v75 = vmul.f32 %v71, %v71
    %vm76 = vcmask 1043456
    %v77 = vsel %vm76, %v72, 0.0
    %v78 = vsel %vm76, %v73, 0.0
    %v79 = vadd.f32 %v77, %v78
    %v80 = vsel %vm76, %v74, 0.0
    %v81 = vadd.f32 %v79, %v80
    %v82 = vsel %vm76, %v75, 0.0
    %v83 = vadd.f32 %v81, %v82
    %84 = vadd.xlane.f32.xlu0 %v83
    %v85 = vpop.xlane.xlu0 %84
    %v86 = vrot.slane %v85, 4
    %v87 = vadd.f32 %v85, %v86
    %v88 = vrot.slane %v87, 2
    %v89 = vadd.f32 %v87, %v88
    %v90 = vrot.slane %v89, 1
    %v91 = vadd.f32 %v89, %v90
    %s92 = vtos %v91
    %s93 = scalar_lea.smem [#allocation2], 0
    %94 = sst [smem:[%s93]] %s92
    // Predicated region
    $region10: #{tpu_custom_call.1} parent=1 // pred_check
      _
    $region11: #{tpu_custom_call.1} parent=1 // pred_check_branch
      %96 = sbr.rel (0) target = $region13
    $region12: #{tpu_custom_call.1} parent=1 // pred_region
      %s98 = ssub.s32 16, 16
      %99 = vsyncadd [#allocation3], %s98
      %102 = dma.smem_to_hbm [#allocation2], 16, %s2, [#allocation3]
    $region13: #{tpu_custom_call.1} parent=1 // pred_fallthru
      _
    // Predicated region
    $region14: #{tpu_custom_call.1} parent=1 // pred_check
      _
    $region15: #{tpu_custom_call.1} parent=1 // pred_check_branch
      %104 = sbr.rel (0) target = $region17
    $region16: #{tpu_custom_call.1} parent=1 // pred_region
      %105 = dma.done [#allocation3], 16
    $region17: #{tpu_custom_call.1} parent=1 // pred_fallthru
      _
    %106 = sfence
    %107 = vsyncpa [#allocation3], 1

</llo_original>
